<compile_context>
chip_gen: v6e
topology: v6e:2x2x1
jax: 0.10.0
libtpu: 0.0.40
codegen_flags: <defaults>
</compile_context>

<pallas_src>
import functools

import jax
import jax.numpy as jnp
from jax.experimental import pallas as pl
from jax.experimental.pallas import tpu as pltpu


def _round_up(n, m):
    return ((n + m - 1) // m) * m


def mlp_kernel(x_ref, w1_ref, b1_ref, w2_ref, b2_ref, o_ref, *, mxu_dtype):
    # In-kernel cast (VPU) -> MXU with f32 accumulation. No wrapper HBM pass for x.
    x = x_ref[...].astype(mxu_dtype)
    h = jnp.dot(x, w1_ref[...], preferred_element_type=jnp.float32)
    h = jnp.maximum(h + b1_ref[...], 0.0)                       # bias + ReLU in f32 (VPU)
    o = jnp.dot(h.astype(w2_ref.dtype), w2_ref[...],
                preferred_element_type=jnp.float32)
    # Narrow (tb, 1) store: only the real output column is written back to HBM.
    o_ref[...] = (o + b2_ref[...]).astype(o_ref.dtype)


@functools.partial(jax.jit, static_argnames=("tile_b", "use_bf16"))
def base_predictor_forward(x, w1, b1, w2, b2, *, tile_b=8192, use_bf16=True):
    """Pallas forward for BasePredictor(n_hidden_layers=1).

    x:  (B, in_size) f32
    w1: (in_size, hidden)  b1: (1, hidden)   (weights stored pre-transposed,
    w2: (hidden, out)      b2: (1, out)       i.e. W^T of torch.nn.Linear)
    Returns jnp.squeeze(y), matching torch's out.squeeze().
    """
    B, in_size = x.shape
    hid = w1.shape[1]
    out_size = w2.shape[1]

    # Batch tile: big enough to amortize per-step overhead, clamped for small B,
    # rounded to 16 rows (bf16 sublane packing; also a multiple of the f32 8-row tile).
    tb = _round_up(min(tile_b, _round_up(B, 16)), 16)
    grid = (pl.cdiv(B, tb),)   # ragged last tile handled by Pallas OOB-write masking

    mxu_dtype = jnp.bfloat16 if use_bf16 else jnp.float32
    # Weights/biases are tiny (<100 KB) and VMEM-resident; casting them here is
    # negligible and does NOT touch the streamed-x path.
    w1c = w1.astype(mxu_dtype)
    w2c = w2.astype(mxu_dtype)
    b1c = b1.astype(jnp.float32)
    b2c = b2.astype(jnp.float32)

    out = pl.pallas_call(
        functools.partial(mlp_kernel, mxu_dtype=mxu_dtype),
        out_shape=jax.ShapeDtypeStruct((B, out_size), jnp.float32),
        grid=grid,
        in_specs=[
            pl.BlockSpec((tb, in_size), lambda i: (i, 0)),     # streamed x tiles (f32)
            pl.BlockSpec((in_size, hid), lambda i: (0, 0)),    # resident weights
            pl.BlockSpec((1, hid), lambda i: (0, 0)),
            pl.BlockSpec((hid, out_size), lambda i: (0, 0)),
            pl.BlockSpec((1, out_size), lambda i: (0, 0)),
        ],
        out_specs=pl.BlockSpec((tb, out_size), lambda i: (i, 0)),
        compiler_params=pltpu.CompilerParams(
            dimension_semantics=("parallel",),
            vmem_limit_bytes=32 * 1024 * 1024,   # explicit budget (safe on v5e/v6e/v7x)
        ),
    )(x, w1c, b1c, w2c, b2c)

    # Match torch's out.squeeze() (drops all size-1 dims; B==1 -> 0-d scalar).
    return jnp.squeeze(out)


def init_params(key, in_size=128, hidden_size=64, out_size=1):
    """Deterministic init mimicking torch.nn.Linear default (uniform +-1/sqrt(fan_in))."""
    k1, k2, k3, k4 = jax.random.split(key, 4)
    bound1 = 1.0 / jnp.sqrt(in_size)
    bound2 = 1.0 / jnp.sqrt(hidden_size)
    # Stored as (in, out) = W^T so the kernel does X @ W^T directly.
    w1 = jax.random.uniform(k1, (in_size, hidden_size), jnp.float32, -bound1, bound1)
    b1 = jax.random.uniform(k2, (1, hidden_size), jnp.float32, -bound1, bound1)
    w2 = jax.random.uniform(k3, (hidden_size, out_size), jnp.float32, -bound2, bound2)
    b2 = jax.random.uniform(k4, (1, out_size), jnp.float32, -bound2, bound2)
    return w1, b1, w2, b2


if __name__ == "__main__":
    key = jax.random.PRNGKey(0)
    k_x, k_p = jax.random.split(key)

    B, IN, HID, OUT = 8, 128, 64, 1
    x = jax.random.normal(k_x, (B, IN), jnp.float32)
    w1, b1, w2, b2 = init_params(k_p, IN, HID, OUT)

    out = jax.block_until_ready(base_predictor_forward(x, w1, b1, w2, b2))
    ref = jnp.squeeze(jnp.maximum(x @ w1 + b1, 0.0) @ w2 + b2)
    assert out.shape == (B,), out.shape
    # bf16 MXU inputs vs f32 reference -> relaxed tolerance
    assert jnp.allclose(out, ref, atol=5e-2, rtol=5e-2), float(jnp.max(jnp.abs(out - ref)))

    # Exercise the multi-step grid + ragged last tile (B=1040, tb=512 -> grid=(3,),
    # last tile only 16 valid rows; OOB writes are dropped by Pallas).
    B2 = 1040
    x2 = jax.random.normal(jax.random.PRNGKey(1), (B2, IN), jnp.float32)
    out2 = jax.block_until_ready(
        base_predictor_forward(x2, w1, b1, w2, b2, tile_b=512))
    ref2 = jnp.squeeze(jnp.maximum(x2 @ w1 + b1, 0.0) @ w2 + b2)
    assert out2.shape == (B2,), out2.shape
    assert jnp.allclose(out2, ref2, atol=5e-2, rtol=5e-2), float(jnp.max(jnp.abs(out2 - ref2)))

    # Also check the f32 (no-bf16) path is near-exact.
    out3 = jax.block_until_ready(
        base_predictor_forward(x2, w1, b1, w2, b2, tile_b=512, use_bf16=False))
    assert jnp.allclose(out3, ref2, atol=1e-5, rtol=1e-5), float(jnp.max(jnp.abs(out3 - ref2)))

    print("KERNEL_OK")
</pallas_src>

<mosaic_0001>
module attributes {stable_mosaic.version = 11 : i64} {
  func.func @mlp_kernel(%arg0: i32, %arg1: memref<16x128xf32, #tpu.memory_space<vmem>>, %arg2: memref<128x64xbf16, #tpu.memory_space<vmem>>, %arg3: memref<1x64xf32, #tpu.memory_space<vmem>>, %arg4: memref<64x1xbf16, #tpu.memory_space<vmem>>, %arg5: memref<1x1xf32, #tpu.memory_space<vmem>>, %arg6: memref<16x1xf32, #tpu.memory_space<vmem>>) attributes {dimension_semantics = [#tpu.dimension_semantics<parallel>], iteration_bounds = array<i64: 1>, scalar_prefetch = 0 : i64, scratch_operands = 0 : i64, tpu.core_type = #tpu.core_type<tc>, window_params = [{transform_indices = @transform_0, window_bounds = array<i64: 16, 128>}, {pipeline_mode = #tpu.pipeline_mode<synchronous>, transform_indices = @transform_1, window_bounds = array<i64: 128, 64>}, {pipeline_mode = #tpu.pipeline_mode<synchronous>, transform_indices = @transform_2, window_bounds = array<i64: 1, 64>}, {pipeline_mode = #tpu.pipeline_mode<synchronous>, transform_indices = @transform_3, window_bounds = array<i64: 64, 1>}, {pipeline_mode = #tpu.pipeline_mode<synchronous>, transform_indices = @transform_4, window_bounds = array<i64: 1, 1>}, {transform_indices = @transform_5, window_bounds = array<i64: 16, 1>}]} {
    %c0 = arith.constant 0 : index
    %c0_0 = arith.constant 0 : index
    %0 = vector.load %arg1[%c0, %c0_0] : memref<16x128xf32, #tpu.memory_space<vmem>>, vector<16x128xf32>
    %1 = arith.truncf %0 : vector<16x128xf32> to vector<16x128xbf16>
    %c0_1 = arith.constant 0 : index
    %c0_2 = arith.constant 0 : index
    %2 = vector.load %arg2[%c0_1, %c0_2] : memref<128x64xbf16, #tpu.memory_space<vmem>>, vector<128x64xbf16>
    %cst = arith.constant dense<0.000000e+00> : vector<16x64xf32>
    %3 = tpu.matmul %1, %2, %cst {dimension_numbers = #tpu.dot_dimension_numbers<[1], [0], [0], [1], [0, 0, 1, 1], [], []>} : vector<16x128xbf16>, vector<128x64xbf16>, vector<16x64xf32> -> vector<16x64xf32>
    %c0_3 = arith.constant 0 : index
    %c0_4 = arith.constant 0 : index
    %4 = vector.load %arg3[%c0_3, %c0_4] : memref<1x64xf32, #tpu.memory_space<vmem>>, vector<1x64xf32>
    %5 = vector.broadcast %4 : vector<1x64xf32> to vector<16x64xf32>
    %6 = arith.addf %3, %5 : vector<16x64xf32>
    %cst_5 = arith.constant 0.000000e+00 : f32
    %7 = vector.broadcast %cst_5 : f32 to vector<16x64xf32>
    %8 = arith.maximumf %6, %7 : vector<16x64xf32>
    %9 = arith.truncf %8 : vector<16x64xf32> to vector<16x64xbf16>
    %c0_6 = arith.constant 0 : index
    %c0_7 = arith.constant 0 : index
    %10 = vector.load %arg4[%c0_6, %c0_7] : memref<64x1xbf16, #tpu.memory_space<vmem>>, vector<64x1xbf16>
    %cst_8 = arith.constant dense<0.000000e+00> : vector<16x1xf32>
    %11 = tpu.matmul %9, %10, %cst_8 {dimension_numbers = #tpu.dot_dimension_numbers<[1], [0], [0], [1], [0, 0, 1, 1], [], []>} : vector<16x64xbf16>, vector<64x1xbf16>, vector<16x1xf32> -> vector<16x1xf32>
    %c0_9 = arith.constant 0 : index
    %c0_10 = arith.constant 0 : index
    %12 = vector.load %arg5[%c0_9, %c0_10] : memref<1x1xf32, #tpu.memory_space<vmem>>, vector<1x1xf32>
    %13 = vector.broadcast %12 : vector<1x1xf32> to vector<16x1xf32>
    %14 = arith.addf %11, %13 : vector<16x1xf32>
    %c0_11 = arith.constant 0 : index
    %c0_12 = arith.constant 0 : index
    %15 = vector.load %arg6[%c0_11, %c0_12] : memref<16x1xf32, #tpu.memory_space<vmem>>, vector<16x1xf32>
    tpu.vector_store %arg6[%c0_11, %c0_12], %14 {strides = array<i32>} : memref<16x1xf32, #tpu.memory_space<vmem>>, vector<16x1xf32>,
    return
  }
  func.func @transform_0(%arg0: i32) -> (i32, i32) {
    %c0_i32 = arith.constant 0 : i32
    %c0_i32_0 = arith.constant 0 : i32
    return %arg0, %c0_i32 : i32, i32
  }
  func.func @transform_1(%arg0: i32) -> (i32, i32) {
    %c0_i32 = arith.constant 0 : i32
    %c0_i32_0 = arith.constant 0 : i32
    %c0_i32_1 = arith.constant 0 : i32
    return %c0_i32, %c0_i32_0 : i32, i32
  }
  func.func @transform_2(%arg0: i32) -> (i32, i32) {
    %c0_i32 = arith.constant 0 : i32
    %c0_i32_0 = arith.constant 0 : i32
    %c0_i32_1 = arith.constant 0 : i32
    return %c0_i32, %c0_i32_0 : i32, i32
  }
  func.func @transform_3(%arg0: i32) -> (i32, i32) {
    %c0_i32 = arith.constant 0 : i32
    %c0_i32_0 = arith.constant 0 : i32
    %c0_i32_1 = arith.constant 0 : i32
    return %c0_i32, %c0_i32_0 : i32, i32
  }
  func.func @transform_4(%arg0: i32) -> (i32, i32) {
    %c0_i32 = arith.constant 0 : i32
    %c0_i32_0 = arith.constant 0 : i32
    %c0_i32_1 = arith.constant 0 : i32
    return %c0_i32, %c0_i32_0 : i32, i32
  }
  func.func @transform_5(%arg0: i32) -> (i32, i32) {
    %c0_i32 = arith.constant 0 : i32
    %c0_i32_0 = arith.constant 0 : i32
    return %arg0, %c0_i32 : i32, i32
  }
}

</mosaic_0001>

<llo_original>
// kernel: base_predictor_forward.1
$region0: #{base_predictor_forward.1}
  #allocation0 [shape = 'u32[]', space=smem, size = 0x4, offset = 0x4, fixed_abs, tag = 'smem constant byte address 0x4 - core index']
  #allocation1 [shape = 'u32[144,128]{1,0:T(1,128)}', space=vmem, size = 0x12000, scoped, tag = 'internal scratch']
  #allocation2 [shape = 'f32[1,1]{1,0:T(1,128)S(1)}', space=vmem, size = 0x200, scoped, tag = 'scoped memory for base_predictor_forward.1']
  %s0 = inlined_call_operand.vmem [shape: f32[8,128], index: 0, kind: input, shape index: {}]
  %s1 = inlined_call_operand.vmem [shape: bf16[128,64], index: 1, kind: input, shape index: {}]
  %s2 = inlined_call_operand.vmem [shape: f32[1,64], index: 2, kind: input, shape index: {}]
  %s3 = inlined_call_operand.vmem [shape: bf16[64,1], index: 3, kind: input, shape index: {}]
  %s4 = inlined_call_operand.<no memory space> [shape: f32[1,1], index: 4, kind: input, shape index: {}]
  %s5 = inlined_call_operand.vmem [shape: f32[8,1], index: 5, kind: output, shape index: {}]
  %s6 = sld [smem:[#allocation0]]
  $region64: #{base_predictor_forward.1} parent=0
    _
  %s8 = ssub.s32 1, %s6
  %s9 = scalar_select 0, %s8, %s6
  %v10 = vstv %s4
  %11 = vst [vmem:[#allocation2] sm:$0x1] %v10
  $region1: #{base_predictor_forward.1} parent=0
    #allocation3 [shape = 'u8[8192]{0}', space=vmem, size = 0x2000, scoped, tag = 'output window, operand 0, single buffered']
    // Predicated region
    $region2: #{base_predictor_forward.1} parent=1 // pred_check
      _
    $region3: #{base_predictor_forward.1} parent=1 // pred_check_branch
      %13 = sbr.rel (0) target = $region5
    $region4: #{base_predictor_forward.1} parent=1 // pred_region
      _
    $region5: #{base_predictor_forward.1} parent=1 // pred_fallthru
      _
    // Predicated region
    $region6: #{base_predictor_forward.1} parent=1 // pred_check
      _
    $region7: #{base_predictor_forward.1} parent=1 // pred_check_branch
      %15 = sbr.rel (0) target = $region9
    $region8: #{base_predictor_forward.1} parent=1 // pred_region
      _
    $region9: #{base_predictor_forward.1} parent=1 // pred_fallthru
      _
    // Predicated region
    $region10: #{base_predictor_forward.1} parent=1 // pred_check
      _
    $region11: #{base_predictor_forward.1} parent=1 // pred_check_branch
      %17 = sbr.rel (0) target = $region13
    $region12: #{base_predictor_forward.1} parent=1 // pred_region
      _
    $region13: #{base_predictor_forward.1} parent=1 // pred_fallthru
      _
    // Predicated region
    $region14: #{base_predictor_forward.1} parent=1 // pred_check
      _
    $region15: #{base_predictor_forward.1} parent=1 // pred_check_branch
      %19 = sbr.rel (0) target = $region17
    $region16: #{base_predictor_forward.1} parent=1 // pred_region
      _
    $region17: #{base_predictor_forward.1} parent=1 // pred_fallthru
      _
    // Predicated region
    $region18: #{base_predictor_forward.1} parent=1 // pred_check
      _
    $region19: #{base_predictor_forward.1} parent=1 // pred_check_branch
      %21 = sbr.rel (0) target = $region21
    $region20: #{base_predictor_forward.1} parent=1 // pred_region
      _
    $region21: #{base_predictor_forward.1} parent=1 // pred_fallthru
      _
    %v23 = vld [vmem:[%s0] sm:$0xff]
    %v24 = vld [vmem:[%s0 + $0x8] sm:$0xff]
    %v25 = vpack.c.bf16 %v24, %v23
    %v26 = vld [vmem:[%s1] sm:$0xf]
    %v27 = vld [vmem:[%s1 + $0x4] sm:$0xf]
    %v28 = vld [vmem:[%s1 + $0x8] sm:$0xf]
    %v29 = vld [vmem:[%s1 + $0xc] sm:$0xf]
    %v30 = vld [vmem:[%s1 + $0x10] sm:$0xf]
    %v31 = vld [vmem:[%s1 + $0x14] sm:$0xf]
    %v32 = vld [vmem:[%s1 + $0x18] sm:$0xf]
    %v33 = vld [vmem:[%s1 + $0x1c] sm:$0xf]
    %v34 = vld [vmem:[%s1 + $0x20] sm:$0xf]
    %v35 = vld [vmem:[%s1 + $0x24] sm:$0xf]
    %v36 = vld [vmem:[%s1 + $0x28] sm:$0xf]
    %v37 = vld [vmem:[%s1 + $0x2c] sm:$0xf]
    %v38 = vld [vmem:[%s1 + $0x30] sm:$0xf]
    %v39 = vld [vmem:[%s1 + $0x34] sm:$0xf]
    %v40 = vld [vmem:[%s1 + $0x38] sm:$0xf]
    %v41 = vld [vmem:[%s1 + $0x3c] sm:$0xf]
    %v42 = vld [vmem:[%s2] sm:$0x1]
    %v44 = vlaneseq
    %v45 = vshrl.u32 %v44, 7
    %v46 = vsub.s32 0, %v45
    %v47 = vrot.slane %v42, %v46
    %v65 = vunpack.c.l.b16 %v26
    %v66 = vunpack.c.l.b16 %v27
    %v67 = vunpack.c.l.b16 %v28
    %v68 = vunpack.c.l.b16 %v29
    %v69 = vunpack.c.l.b16 %v30
    %v70 = vunpack.c.l.b16 %v31
    %v71 = vunpack.c.l.b16 %v32
    %v72 = vunpack.c.l.b16 %v33
    %v73 = vunpack.c.l.b16 %v34
    %v74 = vunpack.c.l.b16 %v35
    %v75 = vunpack.c.l.b16 %v36
    %v76 = vunpack.c.l.b16 %v37
    %v77 = vunpack.c.l.b16 %v38
    %v78 = vunpack.c.l.b16 %v39
    %v79 = vunpack.c.l.b16 %v40
    %v80 = vunpack.c.l.b16 %v41
    %v81 = vpack.c.b16 %v66, %v65
    %v82 = vpack.c.b16 %v68, %v67
    %v83 = vpack.c.b16 %v70, %v69
    %v84 = vpack.c.b16 %v72, %v71
    %v85 = vpack.c.b16 %v74, %v73
    %v86 = vpack.c.b16 %v76, %v75
    %v87 = vpack.c.b16 %v78, %v77
    %v88 = vpack.c.b16 %v80, %v79
    %97 = vmatprep.subr.bf16.mxu0 0
    %98 = vmatpush1.bf16.msra.mxu0 %v88
    %99 = vmatprep.subr.bf16.mxu0 0
    %100 = vmatpush1.bf16.msra.mxu0 %v87
    %101 = vmatprep.subr.bf16.mxu0 0
    %102 = vmatpush1.bf16.msra.mxu0 %v86
    %103 = vmatprep.subr.bf16.mxu0 0
    %104 = vmatpush1.bf16.msra.mxu0 %v85
    %105 = vmatprep.subr.bf16.mxu0 0
    %106 = vmatpush1.bf16.msra.mxu0 %v84
    %107 = vmatprep.subr.bf16.mxu0 0
    %108 = vmatpush1.bf16.msra.mxu0 %v83
    %109 = vmatprep.subr.bf16.mxu0 0
    %110 = vmatpush1.bf16.msra.mxu0 %v82
    %111 = vmatprep.subr.bf16.mxu0 0
    %112 = vmatpush1.bf16.msra.mxu0 %v81
    %113 = vmatprep.subr.bf16.mxu0 0
    %114 = vmatpush2.bf16.msra.mxu0 0
    %115 = vmatprep.subr.bf16.mxu0 0
    %116 = vmatpush2.bf16.msra.mxu0 0
    %117 = vmatprep.subr.bf16.mxu0 0
    %118 = vmatpush2.bf16.msra.mxu0 0
    %119 = vmatprep.subr.bf16.mxu0 0
    %120 = vmatpush2.bf16.msra.mxu0 0
    %121 = vmatprep.subr.bf16.mxu0 0
    %122 = vmatpush2.bf16.msra.mxu0 0
    %123 = vmatprep.subr.bf16.mxu0 0
    %124 = vmatpush2.bf16.msra.mxu0 0
    %125 = vmatprep.subr.bf16.mxu0 0
    %126 = vmatpush2.bf16.msra.mxu0 0
    %127 = vmatprep.subr.bf16.mxu0 0
    %128 = vmatpush2.bf16.msra.mxu0 0
    %129 = vmatprep.mubr.bf16.mxu0 0
    %130 = vmatmul.mubr.bf16.gmra.mxu0 %v25
    %v131 = vpop.f32.mrf.mxu0
    %v132 = vadd.f32 %v47, %v131
    %v133 = vpop.f32.mrf.mxu0
    %v134 = vpop.f32.mrf.mxu0
    %v135 = vadd.f32 %v47, %v134
    %v136 = vpop.f32.mrf.mxu0
    %137 = vdwg.mxu0
    %v138 = vmax.f32 %v132, 0.0
    %v139 = vmax.f32 %v135, 0.0
    %v140 = vpack.c.bf16 %v139, %v138
    %v141 = vld [vmem:[%s3] sm:$0xf]
    %v142 = vld [vmem:[%s3 + $0x4] sm:$0xf]
    %v143 = vld [vmem:[%s3 + $0x8] sm:$0xf]
    %v144 = vld [vmem:[%s3 + $0xc] sm:$0xf]
    %v145 = vld [vmem:[%s3 + $0x10] sm:$0xf]
    %v146 = vld [vmem:[%s3 + $0x14] sm:$0xf]
    %v147 = vld [vmem:[%s3 + $0x18] sm:$0xf]
    %v148 = vld [vmem:[%s3 + $0x1c] sm:$0xf]
    %v149 = vld [vmem:[#allocation2] sm:$0x1]
    %v151 = vlaneseq
    %v152 = vshrl.u32 %v151, 7
    %v153 = vsub.s32 0, %v152
    %v154 = vrot.slane %v149, %v153
    %v164 = vunpack.c.l.b16 %v141
    %v165 = vunpack.c.l.b16 %v142
    %v166 = vunpack.c.l.b16 %v143
    %v167 = vunpack.c.l.b16 %v144
    %v168 = vunpack.c.l.b16 %v145
    %v169 = vunpack.c.l.b16 %v146
    %v170 = vunpack.c.l.b16 %v147
    %v171 = vunpack.c.l.b16 %v148
    %v172 = vpack.c.b16 %v165, %v164
    %v173 = vpack.c.b16 %v167, %v166
    %v174 = vpack.c.b16 %v169, %v168
    %v175 = vpack.c.b16 %v171, %v170
    %vm180 = vcmask 523264
    %v182 = vsel %vm180, %v140, 0
    %184 = vmatprep.subr.bf16.mxu0 0
    %185 = vmatpush1.bf16.msra.mxu0 0
    %186 = vmatprep.subr.bf16.mxu0 0
    %187 = vmatpush1.bf16.msra.mxu0 0
    %188 = vmatprep.subr.bf16.mxu0 0
    %189 = vmatpush1.bf16.msra.mxu0 0
    %190 = vmatprep.subr.bf16.mxu0 0
    %191 = vmatpush1.bf16.msra.mxu0 0
    %192 = vmatprep.subr.bf16.mxu0 0
    %193 = vmatpush1.bf16.msra.mxu0 %v175
    %194 = vmatprep.subr.bf16.mxu0 0
    %195 = vmatpush1.bf16.msra.mxu0 %v174
    %196 = vmatprep.subr.bf16.mxu0 0
    %197 = vmatpush1.bf16.msra.mxu0 %v173
    %198 = vmatprep.subr.bf16.mxu0 0
    %199 = vmatpush1.bf16.msra.mxu0 %v172
    %200 = vmatprep.subr.bf16.mxu0 0
    %201 = vmatpush2.bf16.msra.mxu0 0
    %202 = vmatprep.subr.bf16.mxu0 0
    %203 = vmatpush2.bf16.msra.mxu0 0
    %204 = vmatprep.subr.bf16.mxu0 0
    %205 = vmatpush2.bf16.msra.mxu0 0
    %206 = vmatprep.subr.bf16.mxu0 0
    %207 = vmatpush2.bf16.msra.mxu0 0
    %208 = vmatprep.subr.bf16.mxu0 0
    %209 = vmatpush2.bf16.msra.mxu0 0
    %210 = vmatprep.subr.bf16.mxu0 0
    %211 = vmatpush2.bf16.msra.mxu0 0
    %212 = vmatprep.subr.bf16.mxu0 0
    %213 = vmatpush2.bf16.msra.mxu0 0
    %214 = vmatprep.subr.bf16.mxu0 0
    %215 = vmatpush2.bf16.msra.mxu0 0
    %216 = vmatprep.mubr.bf16.mxu0 0
    %217 = vmatmul.mubr.bf16.gmra.mxu0 %v182
    %v218 = vpop.f32.mrf.mxu0
    %v219 = vadd.f32 %v154, %v218
    %v220 = vpop.f32.mrf.mxu0
    %v221 = vpop.f32.mrf.mxu0
    %v222 = vadd.f32 %v154, %v221
    %v223 = vpop.f32.mrf.mxu0
    %224 = vdwg.mxu0
    %vm225 = vcmask 7168
    %226 = vst.msk [vmem:[#allocation3] sm:$0xff] %vm225, %v219
    %227 = vst.msk [vmem:[#allocation3 + $0x8] sm:$0xff] %vm225, %v222
    // Predicated region
    $region22: #{base_predictor_forward.1} parent=1 // pred_check
      _
    $region23: #{base_predictor_forward.1} parent=1 // pred_check_branch
      %229 = sbr.rel (0) target = $region25
    $region24: #{base_predictor_forward.1} parent=1 // pred_region
      // Predicated region
      $region26: #{base_predictor_forward.1} parent=24 // pred_check
        _
      $region27: #{base_predictor_forward.1} parent=24 // pred_check_branch
        %231 = sbr.rel (0) target = $region29
      $region28: #{base_predictor_forward.1} parent=24 // pred_region
        // Predicated region
        $region30: #{base_predictor_forward.1} parent=28 // pred_check
          _
        $region31: #{base_predictor_forward.1} parent=28 // pred_check_branch
          %233 = sbr.rel (0) target = $region33
        $region32: #{base_predictor_forward.1} parent=28 // pred_region
          // Predicated region
          $region45: #{base_predictor_forward.1} parent=32 // pred_check
            _
          $region46: #{base_predictor_forward.1} parent=32 // pred_check_branch
            %249 = sbr.rel (0) target = $region48
          $region47: #{base_predictor_forward.1} parent=32 // pred_region
            loop: start=0, step=1, limit=1
            $region49: #{base_predictor_forward.1} parent=47 // loop_pre_header
              _
            $region50: #{base_predictor_forward.1} parent=47 // loop_header
              %s251 = sphi 0, %s255
              %p252 = scmp.ge.s32.totalorder %s251, 1
              %s256 = sphi [#allocation3], [#allocation3]
              %s257 = sphi %s5, %s5
            $region51: #{base_predictor_forward.1} parent=47 // loop_header_branch
              %254 = sbr.rel (%p252) target = $region55
            $region52: #{base_predictor_forward.1} parent=47 // loop_body
              %v258 = vld [vmem:[%s256] sm:$0xff]
              %259 = vst [vmem:[%s257] sm:$0xff] %v258
            $region53: #{base_predictor_forward.1} parent=47 // loop_footer
              %s255 = sadd.s32 1, %s251
            $region54: #{base_predictor_forward.1} parent=47 // loop_footer_branch
              %250 = sbr.rel target = $region50
            $region55: #{base_predictor_forward.1} parent=47 // loop_exit
              _
          $region48: #{base_predictor_forward.1} parent=32 // pred_fallthru
            _
          // Predicated region
          $region56: #{base_predictor_forward.1} parent=32 // pred_check
            _
          $region57: #{base_predictor_forward.1} parent=32 // pred_check_branch
            %261 = sbr.rel target = $region59
          $region58: #{base_predictor_forward.1} parent=32 // pred_region
            _
          $region59: #{base_predictor_forward.1} parent=32 // pred_fallthru
            _
        $region33: #{base_predictor_forward.1} parent=28 // pred_fallthru
          _
        // Predicated region
        $region34: #{base_predictor_forward.1} parent=28 // pred_check
          _
        $region35: #{base_predictor_forward.1} parent=28 // pred_check_branch
          %235 = sbr.rel target = $region37
        $region36: #{base_predictor_forward.1} parent=28 // pred_region
          %s237 = ssub.s32 256, 1
          loop: start=0, step=1, limit=1
          $region38: #{base_predictor_forward.1} parent=36 // loop_pre_header
            _
          $region39: #{base_predictor_forward.1} parent=36 // loop_header
            %s239 = sphi 0, %s243
            %p240 = scmp.ge.s32.totalorder %s239, 1
            %s244 = sphi [#allocation3], [#allocation3]
            %s245 = sphi %s5, %s5
          $region40: #{base_predictor_forward.1} parent=36 // loop_header_branch
            %242 = sbr.rel (%p240) target = $region44
          $region41: #{base_predictor_forward.1} parent=36 // loop_body
            %v246 = vld [vmem:[%s244] sm:%s237]
            %247 = vst [vmem:[%s245] sm:%s237] %v246
          $region42: #{base_predictor_forward.1} parent=36 // loop_footer
            %s243 = sadd.s32 1, %s239
          $region43: #{base_predictor_forward.1} parent=36 // loop_footer_branch
            %238 = sbr.rel target = $region39
          $region44: #{base_predictor_forward.1} parent=36 // loop_exit
            _
        $region37: #{base_predictor_forward.1} parent=28 // pred_fallthru
          _
      $region29: #{base_predictor_forward.1} parent=24 // pred_fallthru
        _
      %262 = vnop
    $region25: #{base_predictor_forward.1} parent=1 // pred_fallthru
      _
    // Predicated region
    $region60: #{base_predictor_forward.1} parent=1 // pred_check
      _
    $region61: #{base_predictor_forward.1} parent=1 // pred_check_branch
      %264 = sbr.rel (0) target = $region63
    $region62: #{base_predictor_forward.1} parent=1 // pred_region
      _
    $region63: #{base_predictor_forward.1} parent=1 // pred_fallthru
      _

</llo_original>
